<compile_context>
chip_gen: v5e
topology: v5e:2x2
jax: 0.10.0
libtpu: 0.0.40
codegen_flags: <defaults>
</compile_context>

<pallas_src>
import jax
import jax.numpy as jnp
from jax import lax
from jax.experimental import pallas as pl
from jax.experimental.pallas import tpu as pltpu

SEQ_LEN = 20        # init_state in the PyTorch module hard-codes 20 rows
EMB_SIZE = 27       # LSTM input_size
HIDDEN = 32         # hidden_size (4H = 128)
DICT_SIZE = 27      # vocab size
NUM_CLASSES = 2
LANE = 128          # each gate gets its own lane-aligned 128-wide block


def rnn_classifier_kernel(idx_ref, gtab_ref, wlin_ref, blin_ref, out_ref):
    """Fused gather + single-step LSTM cell + Linear + LogSoftmax(dim=0).

    idx_ref:  (20, 1)    int32 character indices
    gtab_ref: (27, 384)  precomputed emb @ W_ih.T + (b_ih + b_hh), laid out as three
                         lane-aligned 128-blocks [i | g | o]; each gate occupies
                         lanes 0:32 of its block, remaining lanes are exactly 0.
    wlin_ref: (128, 2)   linear weight transposed, zero-padded in rows 32:128
    blin_ref: (1, 2)     linear bias
    out_ref:  (20, 2)    log-probs (softmax over the 20 rows / dim 0)
    """
    # Embedding lookup + input matmul + bias folded into one row gather, implemented
    # as a one-hot matmul on the (otherwise idle) MXU.
    cols = lax.broadcasted_iota(jnp.int32, (SEQ_LEN, DICT_SIZE), 1)
    onehot = (cols == idx_ref[...]).astype(jnp.float32)               # (20, 27)
    gates = jnp.dot(onehot, gtab_ref[...],
                    preferred_element_type=jnp.float32)               # (20, 384)

    # 128-lane-aligned, lane-offset-0 slices only: no masked sub-tile lane selects
    # and no lane rotations needed to align operands for the elementwise products.
    i_act = jax.nn.sigmoid(gates[:, 0 * LANE:1 * LANE])   # i gate in lanes 0:32
    g_act = jnp.tanh(gates[:, 1 * LANE:2 * LANE])         # g gate in lanes 0:32
    o_act = jax.nn.sigmoid(gates[:, 2 * LANE:3 * LANE])   # o gate in lanes 0:32
    # h0 = c0 = 0  =>  forget gate and W_hh never contribute.
    c = i_act * g_act                 # padding lanes: sigmoid(0) * tanh(0) = 0
    h = o_act * jnp.tanh(c)           # (20, 128); lanes 32:128 are exactly 0

    logits = jnp.dot(h, wlin_ref[...],
                     preferred_element_type=jnp.float32) + blin_ref[...]  # (20, 2)

    # LogSoftmax over dim=0 (the 20 rows), per column — nn.LogSoftmax(dim=0).
    m = jnp.max(logits, axis=0, keepdims=True)
    z = logits - m
    lse = jnp.log(jnp.sum(jnp.exp(z), axis=0, keepdims=True))
    out_ref[...] = z - lse


def rnn_classifier_forward(indices, infer_params):
    # Valid only for the single-timestep, zero-initial-state module with 20 rows.
    idx2d = indices.astype(jnp.int32).reshape(SEQ_LEN, 1)
    vmem = pl.BlockSpec(memory_space=pltpu.MemorySpace.VMEM)
    return pl.pallas_call(
        rnn_classifier_kernel,
        out_shape=jax.ShapeDtypeStruct((SEQ_LEN, NUM_CLASSES), jnp.float32),
        in_specs=[vmem, vmem, vmem, vmem],
        out_specs=vmem,
    )(idx2d, infer_params["gate_table"], infer_params["w_lin_pad"],
      infer_params["b_lin"])


def make_params(key):
    """Raw parameters matching the PyTorch module's initializers."""
    k_emb, k_wih, k_bih, k_bhh, k_wlin, k_blin = jax.random.split(key, 6)
    H = HIDDEN
    bound_ih = (6.0 / (EMB_SIZE + 4 * H)) ** 0.5       # xavier_uniform_ on weight_ih
    inv_sqrt_h = 1.0 / (H ** 0.5)
    return {
        "embedding": jax.random.normal(k_emb, (DICT_SIZE, EMB_SIZE), jnp.float32),
        "w_ih": jax.random.uniform(k_wih, (4 * H, EMB_SIZE), jnp.float32,
                                   -bound_ih, bound_ih),
        "b_ih": jax.random.uniform(k_bih, (4 * H,), jnp.float32,
                                   -inv_sqrt_h, inv_sqrt_h),
        "b_hh": jax.random.uniform(k_bhh, (4 * H,), jnp.float32,
                                   -inv_sqrt_h, inv_sqrt_h),
        "w_lin": jax.random.uniform(k_wlin, (NUM_CLASSES, H), jnp.float32,
                                    -inv_sqrt_h, inv_sqrt_h),
        "b_lin": jax.random.uniform(k_blin, (NUM_CLASSES,), jnp.float32,
                                    -inv_sqrt_h, inv_sqrt_h),
    }


def prepare_inference_params(raw):
    """One-time setup: fold embedding + W_ih + biases into a gate table and
    pre-transpose / zero-pad the linear layer (all hoisted off the per-call path)."""
    H = HIDDEN
    # (27, 4H) per-vocab-row pre-activations; PyTorch gate order i, f, g, o.
    full = raw["embedding"] @ raw["w_ih"].T + (raw["b_ih"] + raw["b_hh"])
    gate_table = jnp.zeros((DICT_SIZE, 3 * LANE), jnp.float32)
    gate_table = gate_table.at[:, 0 * LANE:0 * LANE + H].set(full[:, 0 * H:1 * H])  # i
    gate_table = gate_table.at[:, 1 * LANE:1 * LANE + H].set(full[:, 2 * H:3 * H])  # g
    gate_table = gate_table.at[:, 2 * LANE:2 * LANE + H].set(full[:, 3 * H:4 * H])  # o
    w_lin_pad = jnp.zeros((LANE, NUM_CLASSES), jnp.float32)
    w_lin_pad = w_lin_pad.at[:H, :].set(raw["w_lin"].T)
    return {
        "gate_table": gate_table,                              # (27, 384)
        "w_lin_pad": w_lin_pad,                                # (128, 2)
        "b_lin": raw["b_lin"].reshape(1, NUM_CLASSES),         # (1, 2)
    }


def reference_forward(indices, raw):
    """Pure-JAX reference of the PyTorch forward (for correctness checking)."""
    H = HIDDEN
    x = raw["embedding"][indices]                                  # (20, 27)
    gates = x @ raw["w_ih"].T + raw["b_ih"] + raw["b_hh"]          # (20, 128)
    i = jax.nn.sigmoid(gates[:, 0 * H:1 * H])
    g = jnp.tanh(gates[:, 2 * H:3 * H])
    o = jax.nn.sigmoid(gates[:, 3 * H:4 * H])
    c = i * g
    h = o * jnp.tanh(c)
    logits = h @ raw["w_lin"].T + raw["b_lin"]
    return jax.nn.log_softmax(logits, axis=0)


if __name__ == "__main__":
    key = jax.random.PRNGKey(0)
    k_params, k_idx = jax.random.split(key)
    raw = make_params(k_params)
    infer_params = prepare_inference_params(raw)
    indices = jax.random.randint(k_idx, (SEQ_LEN,), 0, DICT_SIZE, dtype=jnp.int32)

    fwd = jax.jit(rnn_classifier_forward)
    out = jax.block_until_ready(fwd(indices, infer_params))

    assert out.shape == (SEQ_LEN, NUM_CLASSES)
    assert out.dtype == jnp.float32
    ref = reference_forward(indices, raw)
    assert bool(jnp.allclose(out, ref, atol=1e-5, rtol=1e-5))
    col_sums = jnp.sum(jnp.exp(out), axis=0)          # log-softmax over dim 0
    assert bool(jnp.all(jnp.abs(col_sums - 1.0) < 1e-4))
    print("KERNEL_OK")
</pallas_src>

<mosaic_0001>
module attributes {stable_mosaic.version = 11 : i64} {
  func.func @rnn_classifier_kernel(%arg0: memref<20x1xi32, #tpu.memory_space<vmem>>, %arg1: memref<27x384xf32, #tpu.memory_space<vmem>>, %arg2: memref<128x2xf32, #tpu.memory_space<vmem>>, %arg3: memref<1x2xf32, #tpu.memory_space<vmem>>, %arg4: memref<20x2xf32, #tpu.memory_space<vmem>>) attributes {dimension_semantics = [], scalar_prefetch = 0 : i64, scratch_operands = 0 : i64, tpu.core_type = #tpu.core_type<tc>} {
    %0 = tpu.iota {dimensions = array<i32: 1>} : vector<20x27xi32>
    %c0 = arith.constant 0 : index
    %c0_0 = arith.constant 0 : index
    %1 = vector.load %arg0[%c0, %c0_0] : memref<20x1xi32, #tpu.memory_space<vmem>>, vector<20x1xi32>
    %2 = vector.broadcast %1 : vector<20x1xi32> to vector<20x27xi32>
    %3 = arith.cmpi eq, %0, %2 : vector<20x27xi32>
    %4 = arith.extui %3 : vector<20x27xi1> to vector<20x27xi32>
    %5 = arith.sitofp %4 : vector<20x27xi32> to vector<20x27xf32>
    %c0_1 = arith.constant 0 : index
    %c0_2 = arith.constant 0 : index
    %6 = vector.load %arg1[%c0_1, %c0_2] : memref<27x384xf32, #tpu.memory_space<vmem>>, vector<27x384xf32>
    %cst = arith.constant dense<0.000000e+00> : vector<20x384xf32>
    %7 = tpu.matmul %5, %6, %cst {dimension_numbers = #tpu.dot_dimension_numbers<[1], [0], [0], [1], [0, 0, 1, 1], [], []>} : vector<20x27xf32>, vector<27x384xf32>, vector<20x384xf32> -> vector<20x384xf32>
    %8 = vector.extract_strided_slice %7 {offsets = [0, 0], sizes = [20, 128], strides = [1, 1]} : vector<20x384xf32> to vector<20x128xf32>
    %9 = arith.negf %8 : vector<20x128xf32>
    %10 = math.exp %9 : vector<20x128xf32>
    %cst_3 = arith.constant 1.000000e+00 : f32
    %11 = vector.broadcast %cst_3 : f32 to vector<20x128xf32>
    %12 = arith.addf %11, %10 : vector<20x128xf32>
    %13 = arith.divf %11, %12 : vector<20x128xf32>
    %14 = vector.extract_strided_slice %7 {offsets = [0, 128], sizes = [20, 128], strides = [1, 1]} : vector<20x384xf32> to vector<20x128xf32>
    %15 = math.tanh %14 : vector<20x128xf32>
    %16 = vector.extract_strided_slice %7 {offsets = [0, 256], sizes = [20, 128], strides = [1, 1]} : vector<20x384xf32> to vector<20x128xf32>
    %17 = arith.negf %16 : vector<20x128xf32>
    %18 = math.exp %17 : vector<20x128xf32>
    %cst_4 = arith.constant 1.000000e+00 : f32
    %19 = vector.broadcast %cst_4 : f32 to vector<20x128xf32>
    %20 = arith.addf %19, %18 : vector<20x128xf32>
    %21 = arith.divf %19, %20 : vector<20x128xf32>
    %22 = arith.mulf %13, %15 : vector<20x128xf32>
    %23 = math.tanh %22 : vector<20x128xf32>
    %24 = arith.mulf %21, %23 : vector<20x128xf32>
    %c0_5 = arith.constant 0 : index
    %c0_6 = arith.constant 0 : index
    %25 = vector.load %arg2[%c0_5, %c0_6] : memref<128x2xf32, #tpu.memory_space<vmem>>, vector<128x2xf32>
    %cst_7 = arith.constant dense<0.000000e+00> : vector<20x2xf32>
    %26 = tpu.matmul %24, %25, %cst_7 {dimension_numbers = #tpu.dot_dimension_numbers<[1], [0], [0], [1], [0, 0, 1, 1], [], []>} : vector<20x128xf32>, vector<128x2xf32>, vector<20x2xf32> -> vector<20x2xf32>
    %c0_8 = arith.constant 0 : index
    %c0_9 = arith.constant 0 : index
    %27 = vector.load %arg3[%c0_8, %c0_9] : memref<1x2xf32, #tpu.memory_space<vmem>>, vector<1x2xf32>
    %28 = vector.broadcast %27 : vector<1x2xf32> to vector<20x2xf32>
    %29 = arith.addf %26, %28 : vector<20x2xf32>
    %cst_10 = arith.constant dense<0xFF800000> : vector<2xf32>
    %30 = vector.multi_reduction <maximumf>, %29, %cst_10 [0] : vector<20x2xf32> to vector<2xf32>
    %31 = vector.shape_cast %30 : vector<2xf32> to vector<1x2xf32>
    %32 = vector.broadcast %31 : vector<1x2xf32> to vector<20x2xf32>
    %33 = arith.subf %29, %32 : vector<20x2xf32>
    %34 = math.exp %33 : vector<20x2xf32>
    %cst_11 = arith.constant dense<0.000000e+00> : vector<2xf32>
    %35 = vector.multi_reduction <add>, %34, %cst_11 [0] : vector<20x2xf32> to vector<2xf32>
    %36 = vector.shape_cast %35 : vector<2xf32> to vector<1x2xf32>
    %37 = math.log %36 : vector<1x2xf32>
    %38 = vector.broadcast %37 : vector<1x2xf32> to vector<20x2xf32>
    %39 = arith.subf %33, %38 : vector<20x2xf32>
    %c0_12 = arith.constant 0 : index
    %c0_13 = arith.constant 0 : index
    %40 = vector.load %arg4[%c0_12, %c0_13] : memref<20x2xf32, #tpu.memory_space<vmem>>, vector<20x2xf32>
    tpu.vector_store %arg4[%c0_12, %c0_13], %39 {strides = array<i32>} : memref<20x2xf32, #tpu.memory_space<vmem>>, vector<20x2xf32>,
    return
  }
}

</mosaic_0001>

<llo_original>
// kernel: rnn_classifier_forward.1
$region0: #{rnn_classifier_forward.1}
  #allocation0 [shape = 'u32[]', space=smem, size = 0x4, offset = 0x4, fixed_abs, tag = 'smem constant byte address 0x4 - core index']
  #allocation1 [shape = 'u32[72,128]{1,0:T(1,128)}', space=vmem, size = 0x9000, scoped, tag = 'internal scratch']
  %s0 = inlined_call_operand.vmem [shape: s32[20,1], index: 0, kind: input, shape index: {}]
  %s1 = inlined_call_operand.vmem [shape: f32[27,384], index: 1, kind: input, shape index: {}]
  %s2 = inlined_call_operand.vmem [shape: f32[128,2], index: 2, kind: input, shape index: {}]
  %s3 = inlined_call_operand.vmem [shape: f32[1,2], index: 3, kind: input, shape index: {}]
  %s4 = inlined_call_operand.vmem [shape: f32[20,2], index: 4, kind: output, shape index: {}]
  %s5 = sld [smem:[#allocation0]]
  $region26: #{rnn_classifier_forward.1} parent=0
    _
  %s7 = ssub.s32 1, %s5
  %s8 = scalar_select 0, %s7, %s5
  // Predicated region
  $region2: #{rnn_classifier_forward.1} parent=0 // pred_check
    _
  $region3: #{rnn_classifier_forward.1} parent=0 // pred_check_branch
    %10 = sbr.rel (0) target = $region5
  $region4: #{rnn_classifier_forward.1} parent=0 // pred_region
    _
  $region5: #{rnn_classifier_forward.1} parent=0 // pred_fallthru
    _
  // Predicated region
  $region6: #{rnn_classifier_forward.1} parent=0 // pred_check
    _
  $region7: #{rnn_classifier_forward.1} parent=0 // pred_check_branch
    %12 = sbr.rel (0) target = $region9
  $region8: #{rnn_classifier_forward.1} parent=0 // pred_region
    _
  $region9: #{rnn_classifier_forward.1} parent=0 // pred_fallthru
    _
  // Predicated region
  $region10: #{rnn_classifier_forward.1} parent=0 // pred_check
    _
  $region11: #{rnn_classifier_forward.1} parent=0 // pred_check_branch
    %14 = sbr.rel (0) target = $region13
  $region12: #{rnn_classifier_forward.1} parent=0 // pred_region
    _
  $region13: #{rnn_classifier_forward.1} parent=0 // pred_fallthru
    _
  // Predicated region
  $region14: #{rnn_classifier_forward.1} parent=0 // pred_check
    _
  $region15: #{rnn_classifier_forward.1} parent=0 // pred_check_branch
    %16 = sbr.rel (0) target = $region17
  $region16: #{rnn_classifier_forward.1} parent=0 // pred_region
    _
  $region17: #{rnn_classifier_forward.1} parent=0 // pred_fallthru
    _
  %v17 = vlaneseq
  %v18 = vand.u32 %v17, 127
  %v19 = vld [vmem:[%s0] sm:$0xff]
  %v20 = vld [vmem:[%s0 + $0x8] sm:$0xff]
  %v21 = vld [vmem:[%s0 + $0x10] sm:$0xf]
  %22 = vset.pattern.permute.xlu0 0
  %23 = vperm.xlu0 %22, %v19
  %v24 = vpop.permute.xlu0 %23
  %25 = vset.pattern.permute.xlu0 0
  %26 = vperm.xlu0 %25, %v20
  %v27 = vpop.permute.xlu0 %26
  %28 = vset.pattern.permute.xlu0 0
  %29 = vperm.xlu0 %28, %v21
  %v30 = vpop.permute.xlu0 %29
  %vm31 = vcmp.eq.s32.totalorder %v18, %v24
  %vm32 = vcmp.eq.s32.totalorder %v18, %v27
  %vm33 = vcmp.eq.s32.totalorder %v18, %v30
  %v34 = vsel %vm31, 1, 0
  %v35 = vsel %vm32, 1, 0
  %v36 = vsel %vm33, 1, 0
  %v37 = vcvt.s32.f32 %v34
  %v38 = vcvt.s32.f32 %v35
  %v39 = vcvt.s32.f32 %v36
  %v40 = vld [vmem:[%s1] sm:$0xff]
  %v41 = vld [vmem:[%s1 + $0x8] sm:$0xff]
  %v42 = vld [vmem:[%s1 + $0x10] sm:$0xff]
  %v43 = vld [vmem:[%s1 + $0x18] sm:$0xff]
  %v44 = vld [vmem:[%s1 + $0x20] sm:$0xff]
  %v45 = vld [vmem:[%s1 + $0x28] sm:$0xff]
  %v46 = vld [vmem:[%s1 + $0x30] sm:$0xff]
  %v47 = vld [vmem:[%s1 + $0x38] sm:$0xff]
  %v48 = vld [vmem:[%s1 + $0x40] sm:$0xff]
  %v49 = vld [vmem:[%s1 + $0x48] sm:$0x7]
  %v50 = vld [vmem:[%s1 + $0x50] sm:$0x7]
  %v51 = vld [vmem:[%s1 + $0x58] sm:$0x7]
  %vm52 = vcmask 220160
  %v54 = vsel %vm52, %v37, 0
  %v57 = vsel %vm52, %v38, 0
  %v60 = vsel %vm52, %v39, 0
  %vm62 = vcmask 1042432
  %v64 = vsel %vm62, %v49, 0
  %v67 = vsel %vm62, %v50, 0
  %v70 = vsel %vm62, %v51, 0
  %72 = vmatpush.msra.mxu0 0.0
  %73 = vmatpush.msra.mxu0 0.0
  %74 = vmatpush.msra.mxu0 0.0
  %75 = vmatpush.msra.mxu0 0.0
  %76 = vmatpush.msra.mxu0 0.0
  %77 = vmatpush.msra.mxu0 0.0
  %78 = vmatpush.msra.mxu0 0.0
  %79 = vmatpush.msra.mxu0 0.0
  %80 = vmatpush.msra.mxu0 0.0
  %81 = vmatpush.msra.mxu0 0.0
  %82 = vmatpush.msra.mxu0 0.0
  %83 = vmatpush.msra.mxu0 0.0
  %84 = vmatpush.msra.mxu0 %v64
  %85 = vmatpush.msra.mxu0 %v46
  %86 = vmatpush.msra.mxu0 %v43
  %87 = vmatpush.msra.mxu0 %v40
  %88 = vmatmul.f32.gmra.mxu0 %v54
  %v89 = vpop.f32.mrf.mxu0
  %v90 = vadd.f32 0.0, %v89
  %91 = vmatmul.f32.gmra.mxu0 %v57
  %v92 = vpop.f32.mrf.mxu0
  %v93 = vadd.f32 0.0, %v92
  %94 = vmatmul.f32.gmra.mxu0 %v60
  %v95 = vpop.f32.mrf.mxu0
  %v96 = vadd.f32 0.0, %v95
  %97 = vdwg.mxu0
  %98 = vmatpush.msra.mxu0 0.0
  %99 = vmatpush.msra.mxu0 0.0
  %100 = vmatpush.msra.mxu0 0.0
  %101 = vmatpush.msra.mxu0 0.0
  %102 = vmatpush.msra.mxu0 0.0
  %103 = vmatpush.msra.mxu0 0.0
  %104 = vmatpush.msra.mxu0 0.0
  %105 = vmatpush.msra.mxu0 0.0
  %106 = vmatpush.msra.mxu0 0.0
  %107 = vmatpush.msra.mxu0 0.0
  %108 = vmatpush.msra.mxu0 0.0
  %109 = vmatpush.msra.mxu0 0.0
  %110 = vmatpush.msra.mxu0 %v67
  %111 = vmatpush.msra.mxu0 %v47
  %112 = vmatpush.msra.mxu0 %v44
  %113 = vmatpush.msra.mxu0 %v41
  %114 = vmatmul.f32.gmra.mxu0 %v54
  %v115 = vpop.f32.mrf.mxu0
  %v116 = vadd.f32 0.0, %v115
  %117 = vmatmul.f32.gmra.mxu0 %v57
  %v118 = vpop.f32.mrf.mxu0
  %v119 = vadd.f32 0.0, %v118
  %120 = vmatmul.f32.gmra.mxu0 %v60
  %v121 = vpop.f32.mrf.mxu0
  %v122 = vadd.f32 0.0, %v121
  %123 = vdwg.mxu0
  %124 = vmatpush.msra.mxu0 0.0
  %125 = vmatpush.msra.mxu0 0.0
  %126 = vmatpush.msra.mxu0 0.0
  %127 = vmatpush.msra.mxu0 0.0
  %128 = vmatpush.msra.mxu0 0.0
  %129 = vmatpush.msra.mxu0 0.0
  %130 = vmatpush.msra.mxu0 0.0
  %131 = vmatpush.msra.mxu0 0.0
  %132 = vmatpush.msra.mxu0 0.0
  %133 = vmatpush.msra.mxu0 0.0
  %134 = vmatpush.msra.mxu0 0.0
  %135 = vmatpush.msra.mxu0 0.0
  %136 = vmatpush.msra.mxu0 %v70
  %137 = vmatpush.msra.mxu0 %v48
  %138 = vmatpush.msra.mxu0 %v45
  %139 = vmatpush.msra.mxu0 %v42
  %140 = vmatmul.f32.gmra.mxu0 %v54
  %v141 = vpop.f32.mrf.mxu0
  %v142 = vadd.f32 0.0, %v141
  %143 = vmatmul.f32.gmra.mxu0 %v57
  %v144 = vpop.f32.mrf.mxu0
  %v145 = vadd.f32 0.0, %v144
  %146 = vmatmul.f32.gmra.mxu0 %v60
  %v147 = vpop.f32.mrf.mxu0
  %v148 = vadd.f32 0.0, %v147
  %149 = vdwg.mxu0
  %v150 = vxor.u32 %v90, 2147483648
  %v151 = vxor.u32 %v93, 2147483648
  %v152 = vxor.u32 %v96, 2147483648
  %v153 = vmul.f32 %v150, 1.442695
  %v154 = vpow.pop %v153
  %v155 = vmul.f32 %v151, 1.442695
  %v156 = vpow.pop %v155
  %v157 = vmul.f32 %v152, 1.442695
  %v158 = vpow.pop %v157
  %v159 = vadd.f32 %v154, 1.0
  %v160 = vadd.f32 %v156, 1.0
  %v161 = vadd.f32 %v158, 1.0
  %v162 = vrcp.pop %v159
  %v163 = vmul.f32 %v159, %v162
  %v164 = vsub.f32 1.0, %v163
  %v165 = vmul.f32 %v162, %v164
  %v166 = vadd.f32 %v162, %v165
  %vm167 = vweird.f32 %v159
  %vm168 = vweird.f32 %v162
  %vm169 = vmor %vm167, %vm168
  %v170 = vsel %vm169, %v162, %v166
  %v171 = vand.u32 2147483647, %v159
  %vm172 = vcmp.eq.f32.partialorder %v171, 8.507059e+37
  %v173 = vand.u32 %v159, 2147483648
  %v174 = vor.u32 1.1754944e-38, %v173
  %v175 = vsel %vm172, %v174, %v170
  %v176 = vmul.f32 1.0, %v175
  %v177 = vrcp.pop %v160
  %v178 = vmul.f32 %v160, %v177
  %v179 = vsub.f32 1.0, %v178
  %v180 = vmul.f32 %v177, %v179
  %v181 = vadd.f32 %v177, %v180
  %vm182 = vweird.f32 %v160
  %vm183 = vweird.f32 %v177
  %vm184 = vmor %vm182, %vm183
  %v185 = vsel %vm184, %v177, %v181
  %v186 = vand.u32 2147483647, %v160
  %vm187 = vcmp.eq.f32.partialorder %v186, 8.507059e+37
  %v188 = vand.u32 %v160, 2147483648
  %v189 = vor.u32 1.1754944e-38, %v188
  %v190 = vsel %vm187, %v189, %v185
  %v191 = vmul.f32 1.0, %v190
  %v192 = vrcp.pop %v161
  %v193 = vmul.f32 %v161, %v192
  %v194 = vsub.f32 1.0, %v193
  %v195 = vmul.f32 %v192, %v194
  %v196 = vadd.f32 %v192, %v195
  %vm197 = vweird.f32 %v161
  %vm198 = vweird.f32 %v192
  %vm199 = vmor %vm197, %vm198
  %v200 = vsel %vm199, %v192, %v196
  %v201 = vand.u32 2147483647, %v161
  %vm202 = vcmp.eq.f32.partialorder %v201, 8.507059e+37
  %v203 = vand.u32 %v161, 2147483648
  %v204 = vor.u32 1.1754944e-38, %v203
  %v205 = vsel %vm202, %v204, %v200
  %v206 = vmul.f32 1.0, %v205
  %v207 = vtanh.pop %v116
  %v208 = vtanh.pop %v119
  %v209 = vtanh.pop %v122
  %v210 = vxor.u32 %v142, 2147483648
  %v211 = vxor.u32 %v145, 2147483648
  %v212 = vxor.u32 %v148, 2147483648
  %v213 = vmul.f32 %v210, 1.442695
  %v214 = vpow.pop %v213
  %v215 = vmul.f32 %v211, 1.442695
  %v216 = vpow.pop %v215
  %v217 = vmul.f32 %v212, 1.442695
  %v218 = vpow.pop %v217
  %v219 = vadd.f32 %v214, 1.0
  %v220 = vadd.f32 %v216, 1.0
  %v221 = vadd.f32 %v218, 1.0
  %v222 = vrcp.pop %v219
  %v223 = vmul.f32 %v219, %v222
  %v224 = vsub.f32 1.0, %v223
  %v225 = vmul.f32 %v222, %v224
  %v226 = vadd.f32 %v222, %v225
  %vm227 = vweird.f32 %v219
  %vm228 = vweird.f32 %v222
  %vm229 = vmor %vm227, %vm228
  %v230 = vsel %vm229, %v222, %v226
  %v231 = vand.u32 2147483647, %v219
  %vm232 = vcmp.eq.f32.partialorder %v231, 8.507059e+37
  %v233 = vand.u32 %v219, 2147483648
  %v234 = vor.u32 1.1754944e-38, %v233
  %v235 = vsel %vm232, %v234, %v230
  %v236 = vmul.f32 1.0, %v235
  %v237 = vrcp.pop %v220
  %v238 = vmul.f32 %v220, %v237
  %v239 = vsub.f32 1.0, %v238
  %v240 = vmul.f32 %v237, %v239
  %v241 = vadd.f32 %v237, %v240
  %vm242 = vweird.f32 %v220
  %vm243 = vweird.f32 %v237
  %vm244 = vmor %vm242, %vm243
  %v245 = vsel %vm244, %v237, %v241
  %v246 = vand.u32 2147483647, %v220
  %vm247 = vcmp.eq.f32.partialorder %v246, 8.507059e+37
  %v248 = vand.u32 %v220, 2147483648
  %v249 = vor.u32 1.1754944e-38, %v248
  %v250 = vsel %vm247, %v249, %v245
  %v251 = vmul.f32 1.0, %v250
  %v252 = vrcp.pop %v221
  %v253 = vmul.f32 %v221, %v252
  %v254 = vsub.f32 1.0, %v253
  %v255 = vmul.f32 %v252, %v254
  %v256 = vadd.f32 %v252, %v255
  %vm257 = vweird.f32 %v221
  %vm258 = vweird.f32 %v252
  %vm259 = vmor %vm257, %vm258
  %v260 = vsel %vm259, %v252, %v256
  %v261 = vand.u32 2147483647, %v221
  %vm262 = vcmp.eq.f32.partialorder %v261, 8.507059e+37
  %v263 = vand.u32 %v221, 2147483648
  %v264 = vor.u32 1.1754944e-38, %v263
  %v265 = vsel %vm262, %v264, %v260
  %v266 = vmul.f32 1.0, %v265
  %v267 = vmul.f32 %v176, %v207
  %v268 = vmul.f32 %v191, %v208
  %v269 = vmul.f32 %v206, %v209
  %v270 = vtanh.pop %v267
  %v271 = vtanh.pop %v268
  %v272 = vtanh.pop %v269
  %v273 = vmul.f32 %v236, %v270
  %v274 = vmul.f32 %v251, %v271
  %v275 = vmul.f32 %v266, %v272
  %v276 = vld [vmem:[%s2] sm:$0xff]
  %v277 = vld [vmem:[%s2 + $0x8] sm:$0xff]
  %v278 = vld [vmem:[%s2 + $0x10] sm:$0xff]
  %v279 = vld [vmem:[%s2 + $0x18] sm:$0xff]
  %v280 = vld [vmem:[%s2 + $0x20] sm:$0xff]
  %v281 = vld [vmem:[%s2 + $0x28] sm:$0xff]
  %v282 = vld [vmem:[%s2 + $0x30] sm:$0xff]
  %v283 = vld [vmem:[%s2 + $0x38] sm:$0xff]
  %v284 = vld [vmem:[%s2 + $0x40] sm:$0xff]
  %v285 = vld [vmem:[%s2 + $0x48] sm:$0xff]
  %v286 = vld [vmem:[%s2 + $0x50] sm:$0xff]
  %v287 = vld [vmem:[%s2 + $0x58] sm:$0xff]
  %v288 = vld [vmem:[%s2 + $0x60] sm:$0xff]
  %v289 = vld [vmem:[%s2 + $0x68] sm:$0xff]
  %v290 = vld [vmem:[%s2 + $0x70] sm:$0xff]
  %v291 = vld [vmem:[%s2 + $0x78] sm:$0xff]
  %v292 = vld [vmem:[%s3] sm:$0x1]
  %v294 = vperm.slane %v292, 0
  %296 = vmatpush.msra.mxu0 %v291
  %297 = vmatpush.msra.mxu0 %v290
  %298 = vmatpush.msra.mxu0 %v289
  %299 = vmatpush.msra.mxu0 %v288
  %300 = vmatpush.msra.mxu0 %v287
  %301 = vmatpush.msra.mxu0 %v286
  %302 = vmatpush.msra.mxu0 %v285
  %303 = vmatpush.msra.mxu0 %v284
  %304 = vmatpush.msra.mxu0 %v283
  %305 = vmatpush.msra.mxu0 %v282
  %306 = vmatpush.msra.mxu0 %v281
  %307 = vmatpush.msra.mxu0 %v280
  %308 = vmatpush.msra.mxu0 %v279
  %309 = vmatpush.msra.mxu0 %v278
  %310 = vmatpush.msra.mxu0 %v277
  %311 = vmatpush.msra.mxu0 %v276
  %312 = vmatmul.f32.gmra.mxu0 %v273
  %v313 = vpop.f32.mrf.mxu0
  %v314 = vadd.f32 %v294, %v313
  %315 = vmatmul.f32.gmra.mxu0 %v274
  %v316 = vpop.f32.mrf.mxu0
  %v317 = vadd.f32 %v294, %v316
  %318 = vmatmul.f32.gmra.mxu0 %v275
  %v319 = vpop.f32.mrf.mxu0
  %v320 = vadd.f32 %v294, %v319
  %321 = vdwg.mxu0
  %vm322 = vcmask 15360
  %v323 = vsel %vm322, %v314, -inf
  %v324 = vsel %vm322, %v317, -inf
  %vm325 = vcmask 11264
  %v326 = vsel %vm325, %v320, -inf
  %v327 = vmax.f32 %v323, %v324
  %v328 = vmax.f32 %v327, %v326
  %v329 = vrot.slane %v328, 4
  %v330 = vmax.f32 %v328, %v329
  %v331 = vrot.slane %v330, 2
  %v332 = vmax.f32 %v330, %v331
  %v333 = vrot.slane %v332, 1
  %v334 = vmax.f32 %v332, %v333
  %v335 = vsub.f32 %v314, %v334
  %v336 = vsub.f32 %v317, %v334
  %v337 = vsub.f32 %v320, %v334
  %v338 = vmul.f32 %v335, 1.442695
  %v339 = vpow.pop %v338
  %v340 = vmul.f32 %v336, 1.442695
  %v341 = vpow.pop %v340
  %v342 = vmul.f32 %v337, 1.442695
  %v343 = vpow.pop %v342
  %v344 = vsel %vm322, %v339, 0.0
  %v345 = vsel %vm322, %v341, 0.0
  %v346 = vadd.f32 %v344, %v345
  %v347 = vsel %vm325, %v343, 0.0
  %v348 = vadd.f32 %v346, %v347
  %v349 = vrot.slane %v348, 4
  %v350 = vadd.f32 %v348, %v349
  %v351 = vrot.slane %v350, 2
  %v352 = vadd.f32 %v350, %v351
  %v353 = vrot.slane %v352, 1
  %v354 = vadd.f32 %v352, %v353
  %v355 = vlog2.pop %v354
  %v356 = vmul.f32 %v355, 0.6931472
  %v357 = vsub.f32 %v335, %v356
  %v358 = vsub.f32 %v336, %v356
  %v359 = vsub.f32 %v337, %v356
  %360 = vst.msk [vmem:[%s4] sm:$0xff] %vm322, %v357
  %361 = vst.msk [vmem:[%s4 + $0x8] sm:$0xff] %vm322, %v358
  %362 = vst.msk [vmem:[%s4 + $0x10] sm:$0xf] %vm325, %v359
  // Predicated region
  $region18: #{rnn_classifier_forward.1} parent=0 // pred_check
    _
  $region19: #{rnn_classifier_forward.1} parent=0 // pred_check_branch
    %364 = sbr.rel (0) target = $region21
  $region20: #{rnn_classifier_forward.1} parent=0 // pred_region
    _
  $region21: #{rnn_classifier_forward.1} parent=0 // pred_fallthru
    _
  // Predicated region
  $region22: #{rnn_classifier_forward.1} parent=0 // pred_check
    _
  $region23: #{rnn_classifier_forward.1} parent=0 // pred_check_branch
    %366 = sbr.rel (0) target = $region25
  $region24: #{rnn_classifier_forward.1} parent=0 // pred_region
    _
  $region25: #{rnn_classifier_forward.1} parent=0 // pred_fallthru
    _

</llo_original>
